<compile_context>
chip_gen: v6e
topology: v6e:2x2x1
jax: 0.10.0
libtpu: 0.0.40
codegen_flags: <defaults>
</compile_context>

<pallas_src>
import functools

import jax
import jax.numpy as jnp
from jax.experimental import pallas as pl
from jax.experimental.pallas import tpu as pltpu


# ---------------------------------------------------------------------------
# shared math helpers (used both inside kernels and in the pure-JAX reference)
# ---------------------------------------------------------------------------
def _leaky_relu(x, slope=0.01):
    return jnp.where(x >= 0, x, slope * x)


def _sigmoid(x):
    # Numerically stable sigmoid: only exponentiates non-positive arguments.
    e = jnp.exp(-jnp.abs(x))
    return jnp.where(x >= 0, 1.0 / (1.0 + e), e / (1.0 + e))


def _round_up(x, m):
    return (x + m - 1) // m * m


def _compiler_params(semantics, working_set_bytes):
    # Explicit scoped-VMEM budget sized to the chosen tiles (headroom for the
    # double buffers), capped at 32 MiB so it is valid on v5e/v6e (128 MiB
    # physical) as well as v7x (64 MiB physical).
    vmem = int(min(max(8 * working_set_bytes, 16 * 2**20), 32 * 2**20))
    return pltpu.CompilerParams(dimension_semantics=semantics,
                                vmem_limit_bytes=vmem)


# ---------------------------------------------------------------------------
# Kernel 1: tiled GraphConv aggregation  activation(A_hat @ M + b)
# ---------------------------------------------------------------------------
def _gcn_aggregate_kernel(a_ref, m_ref, b_ref, o_ref, acc_ref, *, activation):
    k = pl.program_id(1)

    @pl.when(k == 0)
    def _init():
        acc_ref[...] = jnp.zeros_like(acc_ref)

    # bf16 x bf16 MXU matmul, f32 accumulation in VMEM scratch.
    acc_ref[...] += jnp.dot(a_ref[...], m_ref[...],
                            preferred_element_type=jnp.float32)

    @pl.when(k == pl.num_programs(1) - 1)
    def _finalize():
        z = acc_ref[...] + b_ref[...]          # bias + activation in f32
        o_ref[...] = activation(z).astype(o_ref.dtype)


def _gcn_aggregate(a_bf, m_bf, bias_f32, activation, out_dtype, tile_m, tile_k):
    n_pad = a_bf.shape[0]
    feat = m_bf.shape[1]
    grid = (n_pad // tile_m, n_pad // tile_k)

    ws = (2 * (tile_m * tile_k * 2 + tile_k * feat * 2)            # A / M double buffers
          + 2 * tile_m * feat * jnp.dtype(out_dtype).itemsize      # output double buffer
          + tile_m * feat * 4                                      # f32 accumulator
          + feat * 4)                                              # bias (resident)

    kernel = functools.partial(_gcn_aggregate_kernel, activation=activation)
    return pl.pallas_call(
        kernel,
        out_shape=jax.ShapeDtypeStruct((n_pad, feat), out_dtype),
        grid_spec=pltpu.PrefetchScalarGridSpec(
            num_scalar_prefetch=0,
            grid=grid,
            in_specs=[
                pl.BlockSpec((tile_m, tile_k), lambda i, k: (i, k)),  # A_hat tile
                pl.BlockSpec((tile_k, feat), lambda i, k: (k, 0)),    # (X@W) tile
                pl.BlockSpec((1, feat), lambda i, k: (0, 0)),         # bias (resident)
            ],
            out_specs=pl.BlockSpec((tile_m, feat), lambda i, k: (i, 0)),
            scratch_shapes=[pltpu.VMEM((tile_m, feat), jnp.float32)],
        ),
        compiler_params=_compiler_params(("parallel", "arbitrary"), ws),
    )(a_bf, m_bf, bias_f32)


def gcn_forward_pallas(a_hat, x, gp, *, tile_m=None, tile_k=None):
    """Two-layer GraphConv: sigmoid(A @ (leaky(A @ (X W1) + b1) W2) + b2).

    A_hat is streamed twice (one pallas_call per layer); X@W1 and H@W2 are
    computed once outside the A loop (tiny vs. the A traffic)."""
    n = a_hat.shape[0]
    hidden = gp['w1'].shape[1]
    out_f = gp['w2'].shape[1]
    # Auto tile selection: big lane/sublane-dense tiles for large graphs,
    # 128 for small ones (keeps the (row, K) grid exercised at N=256).
    if tile_m is None:
        tile_m = 512 if n >= 1024 else 128
    if tile_k is None:
        tile_k = 512 if n >= 1024 else 128
    n_pad = _round_up(n, max(tile_m, tile_k))

    a_bf = jnp.pad(a_hat, ((0, n_pad - n), (0, n_pad - n))).astype(jnp.bfloat16)
    x_bf = jnp.pad(x, ((0, n_pad - n), (0, 0))).astype(jnp.bfloat16)
    w1_bf = gp['w1'].astype(jnp.bfloat16)
    w2_bf = gp['w2'].astype(jnp.bfloat16)

    xw = jnp.dot(x_bf, w1_bf, preferred_element_type=jnp.float32).astype(jnp.bfloat16)
    h = _gcn_aggregate(a_bf, xw, gp['b1'].reshape(1, hidden).astype(jnp.float32),
                       _leaky_relu, jnp.bfloat16, tile_m, tile_k)
    hw = jnp.dot(h, w2_bf, preferred_element_type=jnp.float32).astype(jnp.bfloat16)
    o = _gcn_aggregate(a_bf, hw, gp['b2'].reshape(1, out_f).astype(jnp.float32),
                       _sigmoid, jnp.float32, tile_m, tile_k)
    return o[:n]


def gcn_forward_reference(a_hat, x, gp):
    """Pure-JAX reference with the same bf16 casts / f32 accumulation."""
    bf = jnp.bfloat16
    a = a_hat.astype(bf)
    xw = jnp.dot(x.astype(bf), gp['w1'].astype(bf),
                 preferred_element_type=jnp.float32).astype(bf)
    h = jnp.dot(a, xw, preferred_element_type=jnp.float32) + gp['b1']
    h = _leaky_relu(h).astype(bf)
    hw = jnp.dot(h, gp['w2'].astype(bf),
                 preferred_element_type=jnp.float32).astype(bf)
    o = jnp.dot(a, hw, preferred_element_type=jnp.float32) + gp['b2']
    return _sigmoid(o)


# ---------------------------------------------------------------------------
# Kernel 2: fused gx -> go_layer -> features -> output_layer head
# ---------------------------------------------------------------------------
def _go_output_kernel(fused_ref, gw_ref, pro_ref,
                      wg1_ref, bg1_ref, wg2_ref, bg2_ref,
                      wo1_ref, bo1_ref, wo2_ref, bo2_ref,
                      gofeat_ref, out_ref):
    bf = jnp.bfloat16
    # gx = go_weights * fused, formed in VMEM (never materialized in HBM).
    gx = fused_ref[...] * gw_ref[...]                                # (T,128) f32
    h = jnp.dot(gx.astype(bf), wg1_ref[...],
                preferred_element_type=jnp.float32) + bg1_ref[...]
    h = _leaky_relu(h)
    g = jnp.dot(h.astype(bf), wg2_ref[...],
                preferred_element_type=jnp.float32) + bg2_ref[...]
    g = _sigmoid(g)                                                  # go_feats
    gofeat_ref[...] = g

    pro = pro_ref[...]                                               # (1,128) f32
    f = pro * g + pro                                                # features
    h2 = jnp.dot(f.astype(bf), wo1_ref[...],
                 preferred_element_type=jnp.float32) + bo1_ref[...]
    h2 = _leaky_relu(h2)
    o = jnp.dot(h2.astype(bf), wo2_ref[...],
                preferred_element_type=jnp.float32) + bo2_ref[...]
    out_ref[...] = _sigmoid(o)                                       # col 0 = logit


def go_output_pallas(fused, go_weights, pro_feats, ep, *, tile=128):
    b, c = go_weights.shape
    d = fused.shape[1]
    c_pad = _round_up(c, tile)

    fused_p = jnp.pad(fused, ((0, c_pad - c), (0, 0))).astype(jnp.float32)
    gw_p = jnp.pad(go_weights, ((0, 0), (0, c_pad - c)))[:, :, None].astype(jnp.float32)
    pro3 = pro_feats[:, None, :].astype(jnp.float32)                 # (B,1,128)

    bf = jnp.bfloat16
    # Pad the 1-wide output head to a full 128-lane slab (lane-dense stores).
    wo2_p = jnp.zeros((d, d), jnp.float32).at[:, 0].set(ep['wo2'][:, 0]).astype(bf)
    bo2_p = jnp.zeros((1, d), jnp.float32).at[0, 0].set(ep['bo2'][0])

    ws = 2 * (3 * tile * d * 4 + tile * 4) + 4 * d * d * 2 + 4 * d * 4
    grid = (b, c_pad // tile)
    go_feats, out_pad = pl.pallas_call(
        _go_output_kernel,
        out_shape=(jax.ShapeDtypeStruct((b, c_pad, d), jnp.float32),
                   jax.ShapeDtypeStruct((b, c_pad, d), jnp.float32)),
        grid_spec=pltpu.PrefetchScalarGridSpec(
            num_scalar_prefetch=0,
            grid=grid,
            in_specs=[
                pl.BlockSpec((tile, d), lambda bi, i: (i, 0)),            # fused
                pl.BlockSpec((None, tile, 1), lambda bi, i: (bi, i, 0)),  # go_weights
                pl.BlockSpec((None, 1, d), lambda bi, i: (bi, 0, 0)),     # pro_feats
                pl.BlockSpec((d, d), lambda bi, i: (0, 0)),               # wg1
                pl.BlockSpec((1, d), lambda bi, i: (0, 0)),               # bg1
                pl.BlockSpec((d, d), lambda bi, i: (0, 0)),               # wg2
                pl.BlockSpec((1, d), lambda bi, i: (0, 0)),               # bg2
                pl.BlockSpec((d, d), lambda bi, i: (0, 0)),               # wo1
                pl.BlockSpec((1, d), lambda bi, i: (0, 0)),               # bo1
                pl.BlockSpec((d, d), lambda bi, i: (0, 0)),               # wo2 (padded)
                pl.BlockSpec((1, d), lambda bi, i: (0, 0)),               # bo2 (padded)
            ],
            out_specs=(pl.BlockSpec((None, tile, d), lambda bi, i: (bi, i, 0)),
                       pl.BlockSpec((None, tile, d), lambda bi, i: (bi, i, 0))),
        ),
        compiler_params=_compiler_params(("parallel", "parallel"), ws),
    )(fused_p, gw_p, pro3,
      ep['wg1'].astype(bf), ep['bg1'].reshape(1, d).astype(jnp.float32),
      ep['wg2'].astype(bf), ep['bg2'].reshape(1, d).astype(jnp.float32),
      ep['wo1'].astype(bf), ep['bo1'].reshape(1, d).astype(jnp.float32),
      wo2_p, bo2_p)
    return go_feats[:, :c, :], out_pad[:, :c, 0]


def go_output_reference(fused, go_weights, pro_feats, ep):
    bf = jnp.bfloat16
    gx = go_weights[:, :, None] * fused[None, :, :]
    h = jnp.einsum('bnd,de->bne', gx.astype(bf), ep['wg1'].astype(bf),
                   preferred_element_type=jnp.float32) + ep['bg1']
    h = _leaky_relu(h)
    g = jnp.einsum('bnd,de->bne', h.astype(bf), ep['wg2'].astype(bf),
                   preferred_element_type=jnp.float32) + ep['bg2']
    g = _sigmoid(g)
    pro = pro_feats[:, None, :]
    f = pro * g + pro
    h2 = jnp.einsum('bnd,de->bne', f.astype(bf), ep['wo1'].astype(bf),
                    preferred_element_type=jnp.float32) + ep['bo1']
    h2 = _leaky_relu(h2)
    o = jnp.einsum('bnd,do->bno', h2.astype(bf), ep['wo2'].astype(bf),
                   preferred_element_type=jnp.float32) + ep['bo2']
    return g, _sigmoid(o)[..., 0]


# ---------------------------------------------------------------------------
# JAX glue for the rest of DuGProModel
# ---------------------------------------------------------------------------
def normalize_adjacency(adj):
    """adj[dst, src]; DGL GraphConv norm='both', degrees clamped to >= 1
    (allow_zero_in_degree=True: zero in-degree nodes just pass scaled bias)."""
    deg_in = jnp.clip(adj.sum(axis=1), 1.0, None)
    deg_out = jnp.clip(adj.sum(axis=0), 1.0, None)
    return jax.lax.rsqrt(deg_in)[:, None] * adj * jax.lax.rsqrt(deg_out)[None, :]


def _dense_trunk(p, pro_esm2):
    # TODO(synk): nn.Dropout(p=0.2) layers are train-only; inference no-ops here.
    # TODO(synk): batch-2 pro_layer/weight_layer ESM MLPs are left to XLA
    #             (weight-traffic bound at 2 rows; no useful Pallas tiling).
    h = jax.nn.relu(pro_esm2 @ p['pro_w1'] + p['pro_b1'])
    h = jax.nn.relu(h @ p['pro_w2'] + p['pro_b2'])
    pro_feats = h @ p['pro_w3'] + p['pro_b3']                    # (B, 128)
    w = jax.nn.relu(pro_esm2 @ p['wl_w1'] + p['wl_b1'])
    w = jax.nn.relu(w @ p['wl_w2'] + p['wl_b2'])
    go_weights = _sigmoid(w @ p['wl_w3'] + p['wl_b3'])           # (B, class_nums)
    return pro_feats, go_weights


def _attention_fusion(go_embeds, w_att):
    scores = jnp.einsum('rcd,do->rco', go_embeds, w_att)         # (R, C, 1)
    scores = jax.nn.softmax(scores, axis=0)                      # softmax over dim=-3
    return jnp.sum(scores * go_embeds, axis=0)                   # (C, 128)


def _kg_loss(go_feats, rel_embed, kg_edges, eps=1e-8):
    total = jnp.float32(0.0)
    for r, (heads, tails) in enumerate(kg_edges):
        if heads is None or heads.shape[0] == 0:
            continue                                             # torch.tensor(0)
        a = go_feats[:, heads, :] + rel_embed[r]
        b = go_feats[:, tails, :]
        na = jnp.sqrt(jnp.sum(a * a, axis=-1))
        nb = jnp.sqrt(jnp.sum(b * b, axis=-1))
        cos = jnp.sum(a * b, axis=-1) / jnp.maximum(na * nb, eps)
        total = total + jnp.mean(1.0 - cos)
    return total


def dugpro_forward(params, pro_esm2, a_hats, kg_edges, *, use_pallas=True):
    pro_feats, go_weights = _dense_trunk(params, pro_esm2)

    gcn_fn = gcn_forward_pallas if use_pallas else gcn_forward_reference
    go_embeds = jnp.stack(
        [gcn_fn(a_hats[r], params['node_embed'], params['gcn'][r])
         for r in range(len(a_hats))], axis=0)                   # (R, C, 128)
    fused = _attention_fusion(go_embeds, params['w_att'])        # (C, 128)

    if use_pallas:
        go_feats, out = go_output_pallas(fused, go_weights, pro_feats,
                                         params['epilogue'])
    else:
        go_feats, out = go_output_reference(fused, go_weights, pro_feats,
                                            params['epilogue'])

    e_loss = _kg_loss(go_feats, params['rel_embed'], kg_edges)
    return out, e_loss                                           # out: (B, class_nums)


# ---------------------------------------------------------------------------
# deterministic parameter / input construction and self-check
# ---------------------------------------------------------------------------
def _glorot(key, shape):
    fan_in, fan_out = shape[0], shape[-1]
    limit = (6.0 / (fan_in + fan_out)) ** 0.5
    return jax.random.uniform(key, shape, jnp.float32, -limit, limit)


def _make_params(key, class_nums, rel_num, embed_dim=128, esm_dim=2560):
    hidden = 2 * embed_dim
    keys = iter(jax.random.split(key, 64))
    nxt = lambda: next(keys)
    small = lambda shape: jax.random.uniform(nxt(), shape, jnp.float32, -0.05, 0.05)
    return {
        'node_embed': _glorot(nxt(), (class_nums, embed_dim)),
        'rel_embed': _glorot(nxt(), (rel_num, embed_dim)),
        'w_att': _glorot(nxt(), (embed_dim, 1)),
        'gcn': [
            {'w1': _glorot(nxt(), (embed_dim, hidden)), 'b1': small((hidden,)),
             'w2': _glorot(nxt(), (hidden, embed_dim)), 'b2': small((embed_dim,))}
            for _ in range(rel_num)],
        'pro_w1': _glorot(nxt(), (esm_dim, esm_dim)), 'pro_b1': small((esm_dim,)),
        'pro_w2': _glorot(nxt(), (esm_dim, 512)), 'pro_b2': small((512,)),
        'pro_w3': _glorot(nxt(), (512, embed_dim)), 'pro_b3': small((embed_dim,)),
        'wl_w1': _glorot(nxt(), (esm_dim, 2 * esm_dim)), 'wl_b1': small((2 * esm_dim,)),
        'wl_w2': _glorot(nxt(), (2 * esm_dim, 2 * esm_dim)), 'wl_b2': small((2 * esm_dim,)),
        'wl_w3': _glorot(nxt(), (2 * esm_dim, class_nums)), 'wl_b3': small((class_nums,)),
        'epilogue': {
            'wg1': _glorot(nxt(), (embed_dim, embed_dim)), 'bg1': small((embed_dim,)),
            'wg2': _glorot(nxt(), (embed_dim, embed_dim)), 'bg2': small((embed_dim,)),
            'wo1': _glorot(nxt(), (embed_dim, embed_dim)), 'bo1': small((embed_dim,)),
            'wo2': _glorot(nxt(), (embed_dim, 1)), 'bo2': small((1,)),
        },
    }


if __name__ == "__main__":
    key = jax.random.PRNGKey(0)
    k_params, k_esm, k_adj, k_kg = jax.random.split(key, 4)

    # Small-but-faithful sizes: module hard-codes embed_dim=128 and the
    # 2560/5120-wide pro/weight MLPs; GO graph kept small (256 terms, 2 relations).
    batch = 2
    class_nums = 256          # number of GO terms == graph nodes
    rel_num = 2               # g1, g2 present; g3/g4 = None
    esm_dim = 2560

    params = _make_params(k_params, class_nums, rel_num, esm_dim=esm_dim)
    pro_esm2 = jax.random.normal(k_esm, (batch, esm_dim), dtype=jnp.float32)

    # Random directed relation graphs (dense adjacency, adj[dst, src]).
    a_hats = []
    for ka in jax.random.split(k_adj, rel_num):
        adj = (jax.random.uniform(ka, (class_nums, class_nums)) < 0.05)
        a_hats.append(normalize_adjacency(adj.astype(jnp.float32)))

    # KG edge id lists for the cosine-similarity loss (relations 3/4 absent -> 0).
    kg_keys = jax.random.split(k_kg, 2 * rel_num)
    kg_edges = [
        (jax.random.randint(kg_keys[2 * r], (32,), 0, class_nums),
         jax.random.randint(kg_keys[2 * r + 1], (32,), 0, class_nums))
        for r in range(rel_num)]

    # Pallas forward.
    out, e_loss = dugpro_forward(params, pro_esm2, a_hats, kg_edges, use_pallas=True)
    out = jax.block_until_ready(out)
    e_loss = jax.block_until_ready(e_loss)

    # Pure-JAX reference with identical dtypes / casting.
    out_ref, e_loss_ref = dugpro_forward(params, pro_esm2, a_hats, kg_edges,
                                         use_pallas=False)

    # Targeted check on the GCN kernel alone.
    g_pal = gcn_forward_pallas(a_hats[0], params['node_embed'], params['gcn'][0])
    g_ref = gcn_forward_reference(a_hats[0], params['node_embed'], params['gcn'][0])

    assert out.shape == (batch, class_nums)
    assert bool(jnp.isfinite(e_loss))
    assert jnp.allclose(g_pal, g_ref, atol=1e-2, rtol=1e-2)
    assert jnp.allclose(out, out_ref, atol=2e-2, rtol=2e-2)
    assert jnp.allclose(e_loss, e_loss_ref, atol=2e-2)

    print("KERNEL_OK")
</pallas_src>

<mosaic_0001>
module attributes {stable_mosaic.version = 11 : i64} {
  func.func @_gcn_aggregate_kernel(%arg0: i32, %arg1: i32, %arg2: memref<128x128xbf16, #tpu.memory_space<vmem>>, %arg3: memref<128x256xbf16, #tpu.memory_space<vmem>>, %arg4: memref<1x256xf32, #tpu.memory_space<vmem>>, %arg5: memref<128x256xbf16, #tpu.memory_space<vmem>>, %arg6: memref<128x256xf32, #tpu.memory_space<vmem>>) attributes {dimension_semantics = [#tpu.dimension_semantics<parallel>, #tpu.dimension_semantics<arbitrary>], iteration_bounds = array<i64: 2, 2>, scalar_prefetch = 0 : i64, scratch_operands = 1 : i64, tpu.core_type = #tpu.core_type<tc>, window_params = [{transform_indices = @transform_0, window_bounds = array<i64: 128, 128>}, {transform_indices = @transform_1, window_bounds = array<i64: 128, 256>}, {pipeline_mode = #tpu.pipeline_mode<synchronous>, transform_indices = @transform_2, window_bounds = array<i64: 1, 256>}, {transform_indices = @transform_3, window_bounds = array<i64: 128, 256>}]} {
    %c0_i32 = arith.constant 0 : i32
    %0 = arith.cmpi eq, %arg1, %c0_i32 : i32
    %1 = arith.extui %0 : i1 to i32
    %c0_i32_0 = arith.constant 0 : i32
    %2 = arith.cmpi ne, %1, %c0_i32_0 : i32
    scf.if %2 {
      %cst_9 = arith.constant 0.000000e+00 : f32
      %12 = vector.broadcast %cst_9 : f32 to vector<128x256xf32>
      %c0_10 = arith.constant 0 : index
      %c0_11 = arith.constant 0 : index
      %13 = vector.load %arg6[%c0_10, %c0_11] : memref<128x256xf32, #tpu.memory_space<vmem>>, vector<128x256xf32>
      tpu.vector_store %arg6[%c0_10, %c0_11], %12 {strides = array<i32>} : memref<128x256xf32, #tpu.memory_space<vmem>>, vector<128x256xf32>,
    } else {
    }
    %c0 = arith.constant 0 : index
    %c0_1 = arith.constant 0 : index
    %3 = vector.load %arg6[%c0, %c0_1] : memref<128x256xf32, #tpu.memory_space<vmem>>, vector<128x256xf32>
    %c0_2 = arith.constant 0 : index
    %c0_3 = arith.constant 0 : index
    %4 = vector.load %arg2[%c0_2, %c0_3] : memref<128x128xbf16, #tpu.memory_space<vmem>>, vector<128x128xbf16>
    %c0_4 = arith.constant 0 : index
    %c0_5 = arith.constant 0 : index
    %5 = vector.load %arg3[%c0_4, %c0_5] : memref<128x256xbf16, #tpu.memory_space<vmem>>, vector<128x256xbf16>
    %cst = arith.constant dense<0.000000e+00> : vector<128x256xf32>
    %6 = tpu.matmul %4, %5, %cst {dimension_numbers = #tpu.dot_dimension_numbers<[1], [0], [0], [1], [0, 0, 1, 1], [], []>} : vector<128x128xbf16>, vector<128x256xbf16>, vector<128x256xf32> -> vector<128x256xf32>
    %7 = arith.addf %3, %6 : vector<128x256xf32>
    %c0_6 = arith.constant 0 : index
    %c0_7 = arith.constant 0 : index
    %8 = vector.load %arg6[%c0_6, %c0_7] : memref<128x256xf32, #tpu.memory_space<vmem>>, vector<128x256xf32>
    tpu.vector_store %arg6[%c0_6, %c0_7], %7 {strides = array<i32>} : memref<128x256xf32, #tpu.memory_space<vmem>>, vector<128x256xf32>,
    %c1_i32 = arith.constant 1 : i32
    %9 = arith.cmpi eq, %arg1, %c1_i32 : i32
    %10 = arith.extui %9 : i1 to i32
    %c0_i32_8 = arith.constant 0 : i32
    %11 = arith.cmpi ne, %10, %c0_i32_8 : i32
    scf.if %11 {
      %c0_9 = arith.constant 0 : index
      %c0_10 = arith.constant 0 : index
      %12 = vector.load %arg6[%c0_9, %c0_10] : memref<128x256xf32, #tpu.memory_space<vmem>>, vector<128x256xf32>
      %c0_11 = arith.constant 0 : index
      %c0_12 = arith.constant 0 : index
      %13 = vector.load %arg4[%c0_11, %c0_12] : memref<1x256xf32, #tpu.memory_space<vmem>>, vector<1x256xf32>
      %14 = vector.broadcast %13 : vector<1x256xf32> to vector<128x256xf32>
      %15 = arith.addf %12, %14 : vector<128x256xf32>
      %cst_13 = arith.constant 0.000000e+00 : f32
      %16 = vector.broadcast %cst_13 : f32 to vector<128x256xf32>
      %17 = arith.cmpf oge, %15, %16 : vector<128x256xf32>
      %cst_14 = arith.constant 0.00999999977 : f32
      %18 = vector.broadcast %cst_14 : f32 to vector<128x256xf32>
      %19 = arith.mulf %18, %15 : vector<128x256xf32>
      %20 = arith.select %17, %15, %19 : vector<128x256xi1>, vector<128x256xf32>
      %21 = arith.truncf %20 : vector<128x256xf32> to vector<128x256xbf16>
      %c0_15 = arith.constant 0 : index
      %c0_16 = arith.constant 0 : index
      %22 = vector.load %arg5[%c0_15, %c0_16] : memref<128x256xbf16, #tpu.memory_space<vmem>>, vector<128x256xbf16>
      tpu.vector_store %arg5[%c0_15, %c0_16], %21 {strides = array<i32>} : memref<128x256xbf16, #tpu.memory_space<vmem>>, vector<128x256xbf16>,
    } else {
    }
    return
  }
  func.func @transform_0(%arg0: i32, %arg1: i32) -> (i32, i32) {
    %c0_i32 = arith.constant 0 : i32
    return %arg0, %arg1 : i32, i32
  }
  func.func @transform_1(%arg0: i32, %arg1: i32) -> (i32, i32) {
    %c0_i32 = arith.constant 0 : i32
    %c0_i32_0 = arith.constant 0 : i32
    return %arg1, %c0_i32 : i32, i32
  }
  func.func @transform_2(%arg0: i32, %arg1: i32) -> (i32, i32) {
    %c0_i32 = arith.constant 0 : i32
    %c0_i32_0 = arith.constant 0 : i32
    %c0_i32_1 = arith.constant 0 : i32
    return %c0_i32, %c0_i32_0 : i32, i32
  }
  func.func @transform_3(%arg0: i32, %arg1: i32) -> (i32, i32) {
    %c0_i32 = arith.constant 0 : i32
    %c0_i32_0 = arith.constant 0 : i32
    return %arg0, %c0_i32 : i32, i32
  }
}

</mosaic_0001>

<llo_original>
// kernel: tpu_custom_call.1
$region0: #{tpu_custom_call.1}
  #allocation0 [shape = 'u32[]', space=smem, size = 0x4, offset = 0x4, fixed_abs, tag = 'smem constant byte address 0x4 - core index']
  #allocation1 [shape = 'u32[144,128]{1,0:T(1,128)}', space=vmem, size = 0x12000, scoped, tag = 'internal scratch']
  #allocation2 [shape = 'f32[128,256]{1,0:T(8,128)}', space=vmem, size = 0x20000, scoped, tag = 'scratch operand']
  %s0 = inlined_call_operand.hbm [shape: bf16[256,256], index: 0, kind: input, shape index: {}]
  %s1 = inlined_call_operand.hbm [shape: bf16[256,256], index: 1, kind: input, shape index: {}]
  %s2 = inlined_call_operand.vmem [shape: f32[1,256], index: 2, kind: input, shape index: {}]
  %s3 = inlined_call_operand.hbm [shape: bf16[256,256], index: 3, kind: output, shape index: {}]
  %s4 = sld [smem:[#allocation0]]
  $region61: #{tpu_custom_call.1} parent=0
    _
  %s6 = ssub.s32 1, %s4
  %s7 = scalar_select 0, %s6, %s4
  $region1: #{tpu_custom_call.1} parent=0
    #allocation3 [shape = 'u8[65536]{0}', space=vmem, size = 0x10000, scoped, tag = 'input window, operand 0']
    #allocation4 [shape = 's32[2]{0}', space=sflag, size = 0x8, scoped, tag = 'scoped memory for tpu_custom_call.1']
    #allocation5 [shape = 's32[2]{0}', space=sflag, size = 0x8, scoped, tag = 'scoped memory for tpu_custom_call.1']
    #allocation6 [shape = 'u8[131072]{0}', space=vmem, size = 0x20000, scoped, tag = 'input window, operand 1']
    #allocation7 [shape = 's32[2]{0}', space=sflag, size = 0x8, scoped, tag = 'scoped memory for tpu_custom_call.1']
    #allocation8 [shape = 'u8[131072]{0}', space=vmem, size = 0x20000, scoped, tag = 'output window, operand 0']
    %8 = vsyncpa [#allocation4], 0
    %s9 = scalar_lea.sflag [#allocation4], 1
    %10 = vsyncpa %s9, 0
    %11 = vsyncpa [#allocation7], 0
    %s12 = scalar_lea.sflag [#allocation7], 1
    %13 = vsyncpa %s12, 0
    %14 = vsyncpa [#allocation5], 0
    %s15 = scalar_lea.sflag [#allocation5], 1
    %16 = vsyncpa %s15, 0
    loop: start=0, step=1, limit=6
    $region2: #{tpu_custom_call.1} parent=1 // loop_pre_header
      _
    $region3: #{tpu_custom_call.1} parent=1 // loop_header
      %s18 = sphi 0, %s22
      %p19 = scmp.ge.s32.totalorder %s18, 6
      %s25 = sphi 0, %s37
      %s26 = sphi 0, %s33
      %s27 = sphi 0, %s25
      %s28 = sphi 0, %s26
      %s29 = sphi 0, %s27
      %s30 = sphi 0, %s28
      %s42 = sphi 0, %s44
      %s45 = sphi 0, %s42
      %s46 = sphi 0, %s45
      %s62 = sphi 0, %s46
      %s68 = sphi 0, %s70
      %s71 = sphi 0, %s68
      %s72 = sphi 0, %s71
      %s88 = sphi 0, %s72
      %s92 = sphi 0, %s92
      %s94 = sphi 0, %s92
      %s95 = sphi 0, %s94
      %s109 = sphi 0, %s95
      %s115 = sphi 0, %s117
      %s118 = sphi 0, %s115
      %s119 = sphi 0, %s118
      %s135 = sphi 0, %s119
    $region4: #{tpu_custom_call.1} parent=1 // loop_header_branch
      %21 = sbr.rel (%p19) target = $region8
    $region5: #{tpu_custom_call.1} parent=1 // loop_body
      %s23 = ssub.s32 %s18, 1
      %s24 = ssub.s32 %s18, 2
      %s31 = sadd.s32 1, %s26
      %p32 = scmp.ge.s32.totalorder %s31, 2
      %s33 = scalar_select %p32, 0, %s31
      %s34 = sadd.s32 1, %s25
      %s35 = scalar_select %p32, %s34, %s25
      %p36 = scmp.ge.s32.totalorder %s35, 2
      %s37 = scalar_select %p36, 0, %s35
      %s38 = ssub.s32 %s25, %s37
      %s39 = ssub.s32 %s26, %s33
      %s40 = sor.u32 %s38, %s39
      %p41 = scmp.eq.s32.totalorder %s40, 0
      %s43 = sadd.s32 %s42, 1
      %s44 = scalar_select %p41, %s42, %s43
      %p47 = pneg %p41
      %p48 = scmp.eq.s32.totalorder %s18, 3
      %p49 = por %p47, %p48
      %p50 = scmp.ne.s32.totalorder %s42, %s45
      %p51 = scmp.eq.s32.totalorder %s18, 0
      %p52 = por %p50, %p51
      %p53 = scmp.ne.s32.totalorder %s42, %s45
      %p54 = scmp.eq.s32.totalorder %s23, 3
      %p55 = por %p53, %p54
      %p56 = scmp.ne.s32.totalorder %s45, %s46
      %p57 = scmp.eq.s32.totalorder %s23, 0
      %p58 = por %p56, %p57
      %p59 = scmp.ne.s32.totalorder %s45, %s46
      %p60 = scmp.eq.s32.totalorder %s24, 3
      %p61 = por %p59, %p60
      %p63 = scmp.ne.s32.totalorder %s46, %s62
      %p64 = scmp.eq.s32.totalorder %s24, 0
      %p65 = por %p63, %p64
      %s66 = ssub.s32 %s26, %s33
      %p67 = scmp.eq.s32.totalorder %s66, 0
      %s69 = sadd.s32 %s68, 1
      %s70 = scalar_select %p67, %s68, %s69
      %p73 = pneg %p67
      %p74 = scmp.eq.s32.totalorder %s18, 3
      %p75 = por %p73, %p74
      %p76 = scmp.ne.s32.totalorder %s68, %s71
      %p77 = scmp.eq.s32.totalorder %s18, 0
      %p78 = por %p76, %p77
      %p79 = scmp.ne.s32.totalorder %s68, %s71
      %p80 = scmp.eq.s32.totalorder %s23, 3
      %p81 = por %p79, %p80
      %p82 = scmp.ne.s32.totalorder %s71, %s72
      %p83 = scmp.eq.s32.totalorder %s23, 0
      %p84 = por %p82, %p83
      %p85 = scmp.ne.s32.totalorder %s71, %s72
      %p86 = scmp.eq.s32.totalorder %s24, 3
      %p87 = por %p85, %p86
      %p89 = scmp.ne.s32.totalorder %s72, %s88
      %p90 = scmp.eq.s32.totalorder %s24, 0
      %p91 = por %p89, %p90
      %s93 = sadd.s32 %s92, 1
      %p96 = scmp.eq.s32.totalorder %s18, 3
      %p97 = scmp.ne.s32.totalorder %s92, %s94
      %p98 = scmp.eq.s32.totalorder %s18, 0
      %p99 = por %p97, %p98
      %p100 = scmp.ne.s32.totalorder %s92, %s94
      %p101 = scmp.eq.s32.totalorder %s23, 3
      %p102 = por %p100, %p101
      %p103 = scmp.ne.s32.totalorder %s94, %s95
      %p104 = scmp.eq.s32.totalorder %s23, 0
      %p105 = por %p103, %p104
      %p106 = scmp.ne.s32.totalorder %s94, %s95
      %p107 = scmp.eq.s32.totalorder %s24, 3
      %p108 = por %p106, %p107
      %p110 = scmp.ne.s32.totalorder %s95, %s109
      %p111 = scmp.eq.s32.totalorder %s24, 0
      %p112 = por %p110, %p111
      %s113 = ssub.s32 %s25, %s37
      %p114 = scmp.eq.s32.totalorder %s113, 0
      %s116 = sadd.s32 %s115, 1
      %s117 = scalar_select %p114, %s115, %s116
      %p120 = pneg %p114
      %p121 = scmp.eq.s32.totalorder %s18, 3
      %p122 = por %p120, %p121
      %p123 = scmp.ne.s32.totalorder %s115, %s118
      %p124 = scmp.eq.s32.totalorder %s18, 0
      %p125 = por %p123, %p124
      %p126 = scmp.ne.s32.totalorder %s115, %s118
      %p127 = scmp.eq.s32.totalorder %s23, 3
      %p128 = por %p126, %p127
      %p129 = scmp.ne.s32.totalorder %s118, %s119
      %p130 = scmp.eq.s32.totalorder %s23, 0
      %p131 = por %p129, %p130
      %p132 = scmp.ne.s32.totalorder %s118, %s119
      %p133 = scmp.eq.s32.totalorder %s24, 3
      %p134 = por %p132, %p133
      %p136 = scmp.ne.s32.totalorder %s119, %s135
      %p137 = scmp.eq.s32.totalorder %s24, 0
      %p138 = por %p136, %p137
      %p139 = scmp.le.s32.totalorder 1, %s18
      %p140 = scmp.lt.s32.totalorder %s18, 5
      %p141 = pnand %p139, %p140
      %p142 = pneg %p141
      // Predicated region
      $region9: #{tpu_custom_call.1} parent=5 // pred_check
        _
      $region10: #{tpu_custom_call.1} parent=5 // pred_check_branch
        %144 = sbr.rel (%p141) target = $region12
      $region11: #{tpu_custom_call.1} parent=5 // pred_region
        %s145 = ssub.s32 %s18, 1
        // Predicated region
        $region13: #{tpu_custom_call.1} parent=11 // pred_check
          %p146 = pneg %p105
        $region14: #{tpu_custom_call.1} parent=11 // pred_check_branch
          %148 = sbr.rel (%p146) target = $region16
        $region15: #{tpu_custom_call.1} parent=11 // pred_region
          _
        $region16: #{tpu_custom_call.1} parent=11 // pred_fallthru
          _
      $region12: #{tpu_custom_call.1} parent=5 // pred_fallthru
        _
      %p149 = scmp.lt.s32.totalorder %s18, 4
      // Predicated region
      $region17: #{tpu_custom_call.1} parent=5 // pred_check
        %p150 = pneg %p149
      $region18: #{tpu_custom_call.1} parent=5 // pred_check_branch
        %152 = sbr.rel (%p150) target = $region20
      $region19: #{tpu_custom_call.1} parent=5 // pred_region
        // Predicated region
        $region21: #{tpu_custom_call.1} parent=19 // pred_check
          %p153 = pneg %p52
        $region22: #{tpu_custom_call.1} parent=19 // pred_check_branch
          %155 = sbr.rel (%p153) target = $region24
        $region23: #{tpu_custom_call.1} parent=19 // pred_region
          %s156 = sand.u32 %s42, 1
          %s157 = scalar_lea.sflag [#allocation4], %s156
          %s158 = sand.u32 %s42, 1
          %s159 = smul.addr %s158, 64
          %s160 = scalar_lea.vmem [#allocation3], %s159
          %s161 = smul.u32 16, %s25
          %s163 = ssub.s32 1024, 1024
          %164 = vsyncadd %s157, %s163
          %s165 = smul.addr %s161, 2
          %s166 = sadd.s32 %s26, %s165
          %s167 = smul.addr %s166, 64
          %s168 = scalar_lea.hbm %s0, %s167
          %s169 = sshll.u32 %s160, 4
          %s170 = int_to_ptr.vmem [resolvable:$true] %s169
          %175 = dma.hbm_to_vmem [thread:$0]  %s168, 1024, %s170, %s157, 128, 64, 4
        $region24: #{tpu_custom_call.1} parent=19 // pred_fallthru
          _
        // Predicated region
        $region25: #{tpu_custom_call.1} parent=19 // pred_check
          %p176 = pneg %p78
        $region26: #{tpu_custom_call.1} parent=19 // pred_check_branch
          %178 = sbr.rel (%p176) target = $region28
        $region27: #{tpu_custom_call.1} parent=19 // pred_region
          %s179 = sand.u32 %s68, 1
          %s180 = scalar_lea.sflag [#allocation7], %s179
          %s181 = sand.u32 %s68, 1
          %s182 = smul.addr %s181, 128
          %s183 = scalar_lea.vmem [#allocation6], %s182
          %s184 = smul.u32 16, %s26
          %s186 = ssub.s32 2048, 2048
          %187 = vsyncadd %s180, %s186
          %s188 = smul.addr %s184, 2
          %s189 = smul.addr %s188, 64
          %s190 = scalar_lea.hbm %s1, %s189
          %s191 = sshll.u32 %s183, 4
          %s192 = int_to_ptr.vmem [resolvable:$true] %s191
          %197 = dma.hbm_to_vmem [thread:$0]  %s190, 2048, %s192, %s180, 128, 128, 8
        $region28: #{tpu_custom_call.1} parent=19 // pred_fallthru
          _
      $region20: #{tpu_custom_call.1} parent=5 // pred_fallthru
        _
      %p198 = scmp.le.s32.totalorder 1, %s18
      %p199 = scmp.lt.s32.totalorder %s18, 5
      %p200 = pnand %p198, %p199
      %p201 = pneg %p200
      // Predicated region
      $region29: #{tpu_custom_call.1} parent=5 // pred_check
        _
      $region30: #{tpu_custom_call.1} parent=5 // pred_check_branch
        %203 = sbr.rel (%p200) target = $region32
      $region31: #{tpu_custom_call.1} parent=5 // pred_region
        %s204 = ssub.s32 %s18, 1
        %s205 = sand.u32 %s45, 1
        %s206 = scalar_lea.sflag [#allocation4], %s205
        %s207 = sand.u32 %s45, 1
        %s208 = smul.addr %s207, 64
        %s209 = scalar_lea.vmem [#allocation3], %s208
        // Predicated region
        $region33: #{tpu_custom_call.1} parent=31 // pred_check
          %p210 = pneg %p58
        $region34: #{tpu_custom_call.1} parent=31 // pred_check_branch
          %212 = sbr.rel (%p210) target = $region36
        $region35: #{tpu_custom_call.1} parent=31 // pred_region
          %213 = dma.done %s206, 1024
        $region36: #{tpu_custom_call.1} parent=31 // pred_fallthru
          _
        %s214 = sand.u32 %s71, 1
        %s215 = scalar_lea.sflag [#allocation7], %s214
        %s216 = sand.u32 %s71, 1
        %s217 = smul.addr %s216, 128
        %s218 = scalar_lea.vmem [#allocation6], %s217
        // Predicated region
        $region37: #{tpu_custom_call.1} parent=31 // pred_check
          %p219 = pneg %p84
        $region38: #{tpu_custom_call.1} parent=31 // pred_check_branch
          %221 = sbr.rel (%p219) target = $region40
        $region39: #{tpu_custom_call.1} parent=31 // pred_region
          %222 = dma.done %s215, 2048
        $region40: #{tpu_custom_call.1} parent=31 // pred_fallthru
          _
        %s223 = sand.u32 %s45, 1
        %s224 = scalar_lea.sflag [#allocation4], %s223
        %s225 = sand.u32 %s45, 1
        %s226 = smul.addr %s225, 64
        %s227 = scalar_lea.vmem [#allocation3], %s226
        %p228 = pneg %p58
        %p229 = pneg %p55
        %s230 = sand.u32 %s71, 1
        %s231 = scalar_lea.sflag [#allocation7], %s230
        %s232 = sand.u32 %s71, 1
        %s233 = smul.addr %s232, 128
        %s234 = scalar_lea.vmem [#allocation6], %s233
        %p235 = pneg %p84
        %p236 = pneg %p81
        %p237 = pneg %p105
        %p238 = pneg %p102
        %p239 = pneg %p131
        %p240 = pneg %p128
        %s241 = sand.u32 %s118, 1
        %s242 = scalar_lea.sflag [#allocation5], %s241
        %s243 = sand.u32 %s118, 1
        %s244 = smul.addr %s243, 128
        %s245 = scalar_lea.vmem [#allocation8], %s244
        %s246 = smul.u32 16, %s27
        %s247 = smul.u32 16, %s28
        %s248 = smul.u32 16, %s27
        %p250 = scmp.eq.s32.totalorder %s28, 0
        // Predicated region
        $region41: #{tpu_custom_call.1} parent=31 // pred_check
          %p251 = pneg %p250
        $region42: #{tpu_custom_call.1} parent=31 // pred_check_branch
          %253 = sbr.rel (%p251) target = $region44
        $region43: #{tpu_custom_call.1} parent=31 // pred_region
          %254 = vst [vmem:[#allocation2] sm:$0xff] 0.0
          %255 = vst [vmem:[#allocation2 + $0x8] sm:$0xff] 0.0
          %256 = vst [vmem:[#allocation2 + $0x10] sm:$0xff] 0.0
          %257 = vst [vmem:[#allocation2 + $0x18] sm:$0xff] 0.0
          %258 = vst [vmem:[#allocation2 + $0x20] sm:$0xff] 0.0
          %259 = vst [vmem:[#allocation2 + $0x28] sm:$0xff] 0.0
          %260 = vst [vmem:[#allocation2 + $0x30] sm:$0xff] 0.0
          %261 = vst [vmem:[#allocation2 + $0x38] sm:$0xff] 0.0
          %262 = vst [vmem:[#allocation2 + $0x40] sm:$0xff] 0.0
          %263 = vst [vmem:[#allocation2 + $0x48] sm:$0xff] 0.0
          %264 = vst [vmem:[#allocation2 + $0x50] sm:$0xff] 0.0
          %265 = vst [vmem:[#allocation2 + $0x58] sm:$0xff] 0.0
          %266 = vst [vmem:[#allocation2 + $0x60] sm:$0xff] 0.0
          %267 = vst [vmem:[#allocation2 + $0x68] sm:$0xff] 0.0
          %268 = vst [vmem:[#allocation2 + $0x70] sm:$0xff] 0.0
          %269 = vst [vmem:[#allocation2 + $0x78] sm:$0xff] 0.0
          %270 = vst [vmem:[#allocation2 + $0x80] sm:$0xff] 0.0
          %271 = vst [vmem:[#allocation2 + $0x88] sm:$0xff] 0.0
          %272 = vst [vmem:[#allocation2 + $0x90] sm:$0xff] 0.0
          %273 = vst [vmem:[#allocation2 + $0x98] sm:$0xff] 0.0
          %274 = vst [vmem:[#allocation2 + $0xa0] sm:$0xff] 0.0
          %275 = vst [vmem:[#allocation2 + $0xa8] sm:$0xff] 0.0
          %276 = vst [vmem:[#allocation2 + $0xb0] sm:$0xff] 0.0
          %277 = vst [vmem:[#allocation2 + $0xb8] sm:$0xff] 0.0
          %278 = vst [vmem:[#allocation2 + $0xc0] sm:$0xff] 0.0
          %279 = vst [vmem:[#allocation2 + $0xc8] sm:$0xff] 0.0
          %280 = vst [vmem:[#allocation2 + $0xd0] sm:$0xff] 0.0
          %281 = vst [vmem:[#allocation2 + $0xd8] sm:$0xff] 0.0
          %282 = vst [vmem:[#allocation2 + $0xe0] sm:$0xff] 0.0
          %283 = vst [vmem:[#allocation2 + $0xe8] sm:$0xff] 0.0
          %284 = vst [vmem:[#allocation2 + $0xf0] sm:$0xff] 0.0
          %285 = vst [vmem:[#allocation2 + $0xf8] sm:$0xff] 0.0
        $region44: #{tpu_custom_call.1} parent=31 // pred_fallthru
          _
        %v286 = vld [vmem:[#allocation2] sm:$0xff]
        %v287 = vld [vmem:[#allocation2 + $0x8] sm:$0xff]
        %v288 = vld [vmem:[#allocation2 + $0x10] sm:$0xff]
        %v289 = vld [vmem:[#allocation2 + $0x18] sm:$0xff]
        %v290 = vld [vmem:[#allocation2 + $0x20] sm:$0xff]
        %v291 = vld [vmem:[#allocation2 + $0x28] sm:$0xff]
        %v292 = vld [vmem:[#allocation2 + $0x30] sm:$0xff]
        %v293 = vld [vmem:[#allocation2 + $0x38] sm:$0xff]
        %v294 = vld [vmem:[#allocation2 + $0x40] sm:$0xff]
        %v295 = vld [vmem:[#allocation2 + $0x48] sm:$0xff]
        %v296 = vld [vmem:[#allocation2 + $0x50] sm:$0xff]
        %v297 = vld [vmem:[#allocation2 + $0x58] sm:$0xff]
        %v298 = vld [vmem:[#allocation2 + $0x60] sm:$0xff]
        %v299 = vld [vmem:[#allocation2 + $0x68] sm:$0xff]
        %v300 = vld [vmem:[#allocation2 + $0x70] sm:$0xff]
        %v301 = vld [vmem:[#allocation2 + $0x78] sm:$0xff]
        %v302 = vld [vmem:[#allocation2 + $0x80] sm:$0xff]
        %v303 = vld [vmem:[#allocation2 + $0x88] sm:$0xff]
        %v304 = vld [vmem:[#allocation2 + $0x90] sm:$0xff]
        %v305 = vld [vmem:[#allocation2 + $0x98] sm:$0xff]
        %v306 = vld [vmem:[#allocation2 + $0xa0] sm:$0xff]
        %v307 = vld [vmem:[#allocation2 + $0xa8] sm:$0xff]
        %v308 = vld [vmem:[#allocation2 + $0xb0] sm:$0xff]
        %v309 = vld [vmem:[#allocation2 + $0xb8] sm:$0xff]
        %v310 = vld [vmem:[#allocation2 + $0xc0] sm:$0xff]
        %v311 = vld [vmem:[#allocation2 + $0xc8] sm:$0xff]
        %v312 = vld [vmem:[#allocation2 + $0xd0] sm:$0xff]
        %v313 = vld [vmem:[#allocation2 + $0xd8] sm:$0xff]
        %v314 = vld [vmem:[#allocation2 + $0xe0] sm:$0xff]
        %v315 = vld [vmem:[#allocation2 + $0xe8] sm:$0xff]
        %v316 = vld [vmem:[#allocation2 + $0xf0] sm:$0xff]
        %v317 = vld [vmem:[#allocation2 + $0xf8] sm:$0xff]
        %v318 = vld [vmem:[%s209] sm:$0xf]
        %v319 = vld [vmem:[%s209 + $0x4] sm:$0xf]
        %v320 = vld [vmem:[%s209 + $0x8] sm:$0xf]
        %v321 = vld [vmem:[%s209 + $0xc] sm:$0xf]
        %v322 = vld [vmem:[%s209 + $0x10] sm:$0xf]
        %v323 = vld [vmem:[%s209 + $0x14] sm:$0xf]
        %v324 = vld [vmem:[%s209 + $0x18] sm:$0xf]
        %v325 = vld [vmem:[%s209 + $0x1c] sm:$0xf]
        %v326 = vld [vmem:[%s209 + $0x20] sm:$0xf]
        %v327 = vld [vmem:[%s209 + $0x24] sm:$0xf]
        %v328 = vld [vmem:[%s209 + $0x28] sm:$0xf]
        %v329 = vld [vmem:[%s209 + $0x2c] sm:$0xf]
        %v330 = vld [vmem:[%s209 + $0x30] sm:$0xf]
        %v331 = vld [vmem:[%s209 + $0x34] sm:$0xf]
        %v332 = vld [vmem:[%s209 + $0x38] sm:$0xf]
        %v333 = vld [vmem:[%s209 + $0x3c] sm:$0xf]
        %v334 = vld [vmem:[%s218] sm:$0xff]
        %v335 = vld [vmem:[%s218 + $0x8] sm:$0xff]
        %v336 = vld [vmem:[%s218 + $0x10] sm:$0xff]
        %v337 = vld [vmem:[%s218 + $0x18] sm:$0xff]
        %v338 = vld [vmem:[%s218 + $0x20] sm:$0xff]
        %v339 = vld [vmem:[%s218 + $0x28] sm:$0xff]
        %v340 = vld [vmem:[%s218 + $0x30] sm:$0xff]
        %v341 = vld [vmem:[%s218 + $0x38] sm:$0xff]
        %v342 = vld [vmem:[%s218 + $0x40] sm:$0xff]
        %v343 = vld [vmem:[%s218 + $0x48] sm:$0xff]
        %v344 = vld [vmem:[%s218 + $0x50] sm:$0xff]
        %v345 = vld [vmem:[%s218 + $0x58] sm:$0xff]
        %v346 = vld [vmem:[%s218 + $0x60] sm:$0xff]
        %v347 = vld [vmem:[%s218 + $0x68] sm:$0xff]
        %v348 = vld [vmem:[%s218 + $0x70] sm:$0xff]
        %v349 = vld [vmem:[%s218 + $0x78] sm:$0xff]
        %v366 = vunpack.c.l.b16 %v318
        %v367 = vunpack.c.l.b16 %v319
        %v368 = vunpack.c.l.b16 %v320
        %v369 = vunpack.c.l.b16 %v321
        %v370 = vunpack.c.l.b16 %v322
        %v371 = vunpack.c.l.b16 %v323
        %v372 = vunpack.c.l.b16 %v324
        %v373 = vunpack.c.l.b16 %v325
        %v374 = vunpack.c.l.b16 %v326
        %v375 = vunpack.c.l.b16 %v327
        %v376 = vunpack.c.l.b16 %v328
        %v377 = vunpack.c.l.b16 %v329
        %v378 = vunpack.c.l.b16 %v330
        %v379 = vunpack.c.l.b16 %v331
        %v380 = vunpack.c.l.b16 %v332
        %v381 = vunpack.c.l.b16 %v333
        %v382 = vpack.c.b16 %v367, %v366
        %v383 = vpack.c.b16 %v369, %v368
        %v384 = vpack.c.b16 %v371, %v370
        %v385 = vpack.c.b16 %v373, %v372
        %v386 = vpack.c.b16 %v375, %v374
        %v387 = vpack.c.b16 %v377, %v376
        %v388 = vpack.c.b16 %v379, %v378
        %v389 = vpack.c.b16 %v381, %v380
        %v414 = vunpack.c.l.b16 %v334
        %v415 = vunpack.c.h.b16 %v334
        %v416 = vunpack.c.l.b16 %v335
        %v417 = vunpack.c.h.b16 %v335
        %v418 = vunpack.c.l.b16 %v336
        %v419 = vunpack.c.h.b16 %v336
        %v420 = vunpack.c.l.b16 %v337
        %v421 = vunpack.c.h.b16 %v337
        %v422 = vunpack.c.l.b16 %v338
        %v423 = vunpack.c.h.b16 %v338
        %v424 = vunpack.c.l.b16 %v339
        %v425 = vunpack.c.h.b16 %v339
        %v426 = vunpack.c.l.b16 %v340
        %v427 = vunpack.c.h.b16 %v340
        %v428 = vunpack.c.l.b16 %v341
        %v429 = vunpack.c.h.b16 %v341
        %v430 = vunpack.c.l.b16 %v342
        %v431 = vunpack.c.h.b16 %v342
        %v432 = vunpack.c.l.b16 %v343
        %v433 = vunpack.c.h.b16 %v343
        %v434 = vunpack.c.l.b16 %v344
        %v435 = vunpack.c.h.b16 %v344
        %v436 = vunpack.c.l.b16 %v345
        %v437 = vunpack.c.h.b16 %v345
        %v438 = vunpack.c.l.b16 %v346
        %v439 = vunpack.c.h.b16 %v346
        %v440 = vunpack.c.l.b16 %v347
        %v441 = vunpack.c.h.b16 %v347
        %v442 = vunpack.c.l.b16 %v348
        %v443 = vunpack.c.h.b16 %v348
        %v444 = vunpack.c.l.b16 %v349
        %v445 = vunpack.c.h.b16 %v349
        %v446 = vpack.c.b16 %v416, %v414
        %v447 = vpack.c.b16 %v417, %v415
        %v448 = vpack.c.b16 %v420, %v418
        %v449 = vpack.c.b16 %v421, %v419
        %v450 = vpack.c.b16 %v424, %v422
        %v451 = vpack.c.b16 %v425, %v423
        %v452 = vpack.c.b16 %v428, %v426
        %v453 = vpack.c.b16 %v429, %v427
        %v454 = vpack.c.b16 %v432, %v430
        %v455 = vpack.c.b16 %v433, %v431
        %v456 = vpack.c.b16 %v436, %v434
        %v457 = vpack.c.b16 %v437, %v435
        %v458 = vpack.c.b16 %v440, %v438
        %v459 = vpack.c.b16 %v441, %v439
        %v460 = vpack.c.b16 %v444, %v442
        %v461 = vpack.c.b16 %v445, %v443
        %478 = vmatprep.subr.bf16.mxu0 %v461
        %479 = vmatpush1.bf16.msra.mxu0 %v460
        %480 = vmatprep.subr.bf16.mxu0 %v459
        %481 = vmatpush1.bf16.msra.mxu0 %v458
        %482 = vmatprep.subr.bf16.mxu0 %v457
        %483 = vmatpush1.bf16.msra.mxu0 %v456
        %484 = vmatprep.subr.bf16.mxu0 %v455
        %485 = vmatpush1.bf16.msra.mxu0 %v454
        %486 = vmatprep.subr.bf16.mxu0 %v453
        %487 = vmatpush1.bf16.msra.mxu0 %v452
        %488 = vmatprep.subr.bf16.mxu0 %v451
        %489 = vmatpush1.bf16.msra.mxu0 %v450
        %490 = vmatprep.subr.bf16.mxu0 %v449
        %491 = vmatpush1.bf16.msra.mxu0 %v448
        %492 = vmatprep.subr.bf16.mxu0 %v447
        %493 = vmatpush1.bf16.msra.mxu0 %v446
        %494 = vmatprep.subr.bf16.mxu0 0
        %495 = vmatpush2.bf16.msra.mxu0 0
        %496 = vmatprep.subr.bf16.mxu0 0
        %497 = vmatpush2.bf16.msra.mxu0 0
        %498 = vmatprep.subr.bf16.mxu0 0
        %499 = vmatpush2.bf16.msra.mxu0 0
        %500 = vmatprep.subr.bf16.mxu0 0
        %501 = vmatpush2.bf16.msra.mxu0 0
        %502 = vmatprep.subr.bf16.mxu0 0
        %503 = vmatpush2.bf16.msra.mxu0 0
        %504 = vmatprep.subr.bf16.mxu0 0
        %505 = vmatpush2.bf16.msra.mxu0 0
        %506 = vmatprep.subr.bf16.mxu0 0
        %507 = vmatpush2.bf16.msra.mxu0 0
        %508 = vmatprep.subr.bf16.mxu0 0
        %509 = vmatpush2.bf16.msra.mxu0 0
        %510 = vmatprep.mubr.bf16.mxu0 0
        %511 = vmatmul.mubr.bf16.gmra.mxu0 %v382
        %v512 = vpop.f32.mrf.mxu0
        %v513 = vadd.f32 0.0, %v512
        %v514 = vpop.f32.mrf.mxu0
        %v515 = vadd.f32 0.0, %v514
        %v516 = vpop.f32.mrf.mxu0
        %v517 = vadd.f32 0.0, %v516
        %v518 = vpop.f32.mrf.mxu0
        %v519 = vadd.f32 0.0, %v518
        %520 = vmatprep.mubr.bf16.mxu0 0
        %521 = vmatmul.mubr.bf16.gmra.mxu0 %v383
        %v522 = vpop.f32.mrf.mxu0
        %v523 = vadd.f32 0.0, %v522
        %v524 = vpop.f32.mrf.mxu0
        %v525 = vadd.f32 0.0, %v524
        %v526 = vpop.f32.mrf.mxu0
        %v527 = vadd.f32 0.0, %v526
        %v528 = vpop.f32.mrf.mxu0
        %v529 = vadd.f32 0.0, %v528
        %530 = vmatprep.mubr.bf16.mxu0 0
        %531 = vmatmul.mubr.bf16.gmra.mxu0 %v384
        %v532 = vpop.f32.mrf.mxu0
        %v533 = vadd.f32 0.0, %v532
        %v534 = vpop.f32.mrf.mxu0
        %v535 = vadd.f32 0.0, %v534
        %v536 = vpop.f32.mrf.mxu0
        %v537 = vadd.f32 0.0, %v536
        %v538 = vpop.f32.mrf.mxu0
        %v539 = vadd.f32 0.0, %v538
        %540 = vmatprep.mubr.bf16.mxu0 0
        %541 = vmatmul.mubr.bf16.gmra.mxu0 %v385
        %v542 = vpop.f32.mrf.mxu0
        %v543 = vadd.f32 0.0, %v542
        %v544 = vpop.f32.mrf.mxu0
        %v545 = vadd.f32 0.0, %v544
        %v546 = vpop.f32.mrf.mxu0
        %v547 = vadd.f32 0.0, %v546
        %v548 = vpop.f32.mrf.mxu0
        %v549 = vadd.f32 0.0, %v548
        %550 = vmatprep.mubr.bf16.mxu0 0
        %551 = vmatmul.mubr.bf16.gmra.mxu0 %v386
        %v552 = vpop.f32.mrf.mxu0
        %v553 = vadd.f32 0.0, %v552
        %v554 = vpop.f32.mrf.mxu0
        %v555 = vadd.f32 0.0, %v554
        %v556 = vpop.f32.mrf.mxu0
        %v557 = vadd.f32 0.0, %v556
        %v558 = vpop.f32.mrf.mxu0
        %v559 = vadd.f32 0.0, %v558
        %560 = vmatprep.mubr.bf16.mxu0 0
        %561 = vmatmul.mubr.bf16.gmra.mxu0 %v387
        %v562 = vpop.f32.mrf.mxu0
        %v563 = vadd.f32 0.0, %v562
        %v564 = vpop.f32.mrf.mxu0
        %v565 = vadd.f32 0.0, %v564
        %v566 = vpop.f32.mrf.mxu0
        %v567 = vadd.f32 0.0, %v566
        %v568 = vpop.f32.mrf.mxu0
        %v569 = vadd.f32 0.0, %v568
        %570 = vmatprep.mubr.bf16.mxu0 0
        %571 = vmatmul.mubr.bf16.gmra.mxu0 %v388
        %v572 = vpop.f32.mrf.mxu0
        %v573 = vadd.f32 0.0, %v572
        %v574 = vpop.f32.mrf.mxu0
        %v575 = vadd.f32 0.0, %v574
        %v576 = vpop.f32.mrf.mxu0
        %v577 = vadd.f32 0.0, %v576
        %v578 = vpop.f32.mrf.mxu0
        %v579 = vadd.f32 0.0, %v578
        %580 = vmatprep.mubr.bf16.mxu0 0
        %581 = vmatmul.mubr.bf16.gmra.mxu0 %v389
        %v582 = vpop.f32.mrf.mxu0
        %v583 = vadd.f32 0.0, %v582
        %v584 = vpop.f32.mrf.mxu0
        %v585 = vadd.f32 0.0, %v584
        %v586 = vpop.f32.mrf.mxu0
        %v587 = vadd.f32 0.0, %v586
        %v588 = vpop.f32.mrf.mxu0
        %v589 = vadd.f32 0.0, %v588
        %590 = vdwg.mxu0
        %v591 = vadd.f32 %v286, %v513
        %v592 = vadd.f32 %v287, %v515
        %v593 = vadd.f32 %v288, %v517
        %v594 = vadd.f32 %v289, %v519
        %v595 = vadd.f32 %v290, %v523
        %v596 = vadd.f32 %v291, %v525
        %v597 = vadd.f32 %v292, %v527
        %v598 = vadd.f32 %v293, %v529
        %v599 = vadd.f32 %v294, %v533
        %v600 = vadd.f32 %v295, %v535
        %v601 = vadd.f32 %v296, %v537
        %v602 = vadd.f32 %v297, %v539
        %v603 = vadd.f32 %v298, %v543
        %v604 = vadd.f32 %v299, %v545
        %v605 = vadd.f32 %v300, %v547
        %v606 = vadd.f32 %v301, %v549
        %v607 = vadd.f32 %v302, %v553
        %v608 = vadd.f32 %v303, %v555
        %v609 = vadd.f32 %v304, %v557
        %v610 = vadd.f32 %v305, %v559
        %v611 = vadd.f32 %v306, %v563
        %v612 = vadd.f32 %v307, %v565
        %v613 = vadd.f32 %v308, %v567
        %v614 = vadd.f32 %v309, %v569
        %v615 = vadd.f32 %v310, %v573
        %v616 = vadd.f32 %v311, %v575
        %v617 = vadd.f32 %v312, %v577
        %v618 = vadd.f32 %v313, %v579
        %v619 = vadd.f32 %v314, %v583
        %v620 = vadd.f32 %v315, %v585
        %v621 = vadd.f32 %v316, %v587
        %v622 = vadd.f32 %v317, %v589
        %623 = vst [vmem:[#allocation2] sm:$0xff] %v591
        %624 = vst [vmem:[#allocation2 + $0x8] sm:$0xff] %v592
        %625 = vst [vmem:[#allocation2 + $0x10] sm:$0xff] %v593
        %626 = vst [vmem:[#allocation2 + $0x18] sm:$0xff] %v594
        %627 = vst [vmem:[#allocation2 + $0x20] sm:$0xff] %v595
        %628 = vst [vmem:[#allocation2 + $0x28] sm:$0xff] %v596
        %629 = vst [vmem:[#allocation2 + $0x30] sm:$0xff] %v597
        %630 = vst [vmem:[#allocation2 + $0x38] sm:$0xff] %v598
        %631 = vst [vmem:[#allocation2 + $0x40] sm:$0xff] %v599
        %632 = vst [vmem:[#allocation2 + $0x48] sm:$0xff] %v600
        %633 = vst [vmem:[#allocation2 + $0x50] sm:$0xff] %v601
        %634 = vst [vmem:[#allocation2 + $0x58] sm:$0xff] %v602
        %635 = vst [vmem:[#allocation2 + $0x60] sm:$0xff] %v603
        %636 = vst [vmem:[#allocation2 + $0x68] sm:$0xff] %v604
        %637 = vst [vmem:[#allocation2 + $0x70] sm:$0xff] %v605
        %638 = vst [vmem:[#allocation2 + $0x78] sm:$0xff] %v606
        %639 = vst [vmem:[#allocation2 + $0x80] sm:$0xff] %v607
        %640 = vst [vmem:[#allocation2 + $0x88] sm:$0xff] %v608
        %641 = vst [vmem:[#allocation2 + $0x90] sm:$0xff] %v609
        %642 = vst [vmem:[#allocation2 + $0x98] sm:$0xff] %v610
        %643 = vst [vmem:[#allocation2 + $0xa0] sm:$0xff] %v611
        %644 = vst [vmem:[#allocation2 + $0xa8] sm:$0xff] %v612
        %645 = vst [vmem:[#allocation2 + $0xb0] sm:$0xff] %v613
        %646 = vst [vmem:[#allocation2 + $0xb8] sm:$0xff] %v614
        %647 = vst [vmem:[#allocation2 + $0xc0] sm:$0xff] %v615
        %648 = vst [vmem:[#allocation2 + $0xc8] sm:$0xff] %v616
        %649 = vst [vmem:[#allocation2 + $0xd0] sm:$0xff] %v617
        %650 = vst [vmem:[#allocation2 + $0xd8] sm:$0xff] %v618
        %651 = vst [vmem:[#allocation2 + $0xe0] sm:$0xff] %v619
        %652 = vst [vmem:[#allocation2 + $0xe8] sm:$0xff] %v620
        %653 = vst [vmem:[#allocation2 + $0xf0] sm:$0xff] %v621
        %654 = vst [vmem:[#allocation2 + $0xf8] sm:$0xff] %v622
        %p655 = scmp.eq.s32.totalorder %s28, 1
        // Predicated region
        $region45: #{tpu_custom_call.1} parent=31 // pred_check
          %p656 = pneg %p655
        $region46: #{tpu_custom_call.1} parent=31 // pred_check_branch
          %658 = sbr.rel (%p656) target = $region48
        $region47: #{tpu_custom_call.1} parent=31 // pred_region
          %v659 = vld [vmem:[#allocation2] sm:$0xff]
          %v660 = vld [vmem:[#allocation2 + $0x8] sm:$0xff]
          %v661 = vld [vmem:[#allocation2 + $0x10] sm:$0xff]
          %v662 = vld [vmem:[#allocation2 + $0x18] sm:$0xff]
          %v663 = vld [vmem:[#allocation2 + $0x20] sm:$0xff]
          %v664 = vld [vmem:[#allocation2 + $0x28] sm:$0xff]
          %v665 = vld [vmem:[#allocation2 + $0x30] sm:$0xff]
          %v666 = vld [vmem:[#allocation2 + $0x38] sm:$0xff]
          %v667 = vld [vmem:[#allocation2 + $0x40] sm:$0xff]
          %v668 = vld [vmem:[#allocation2 + $0x48] sm:$0xff]
          %v669 = vld [vmem:[#allocation2 + $0x50] sm:$0xff]
          %v670 = vld [vmem:[#allocation2 + $0x58] sm:$0xff]
          %v671 = vld [vmem:[#allocation2 + $0x60] sm:$0xff]
          %v672 = vld [vmem:[#allocation2 + $0x68] sm:$0xff]
          %v673 = vld [vmem:[#allocation2 + $0x70] sm:$0xff]
          %v674 = vld [vmem:[#allocation2 + $0x78] sm:$0xff]
          %v675 = vld [vmem:[#allocation2 + $0x80] sm:$0xff]
          %v676 = vld [vmem:[#allocation2 + $0x88] sm:$0xff]
          %v677 = vld [vmem:[#allocation2 + $0x90] sm:$0xff]
          %v678 = vld [vmem:[#allocation2 + $0x98] sm:$0xff]
          %v679 = vld [vmem:[#allocation2 + $0xa0] sm:$0xff]
          %v680 = vld [vmem:[#allocation2 + $0xa8] sm:$0xff]
          %v681 = vld [vmem:[#allocation2 + $0xb0] sm:$0xff]
          %v682 = vld [vmem:[#allocation2 + $0xb8] sm:$0xff]
          %v683 = vld [vmem:[#allocation2 + $0xc0] sm:$0xff]
          %v684 = vld [vmem:[#allocation2 + $0xc8] sm:$0xff]
          %v685 = vld [vmem:[#allocation2 + $0xd0] sm:$0xff]
          %v686 = vld [vmem:[#allocation2 + $0xd8] sm:$0xff]
          %v687 = vld [vmem:[#allocation2 + $0xe0] sm:$0xff]
          %v688 = vld [vmem:[#allocation2 + $0xe8] sm:$0xff]
          %v689 = vld [vmem:[#allocation2 + $0xf0] sm:$0xff]
          %v690 = vld [vmem:[#allocation2 + $0xf8] sm:$0xff]
          %v691 = vld [vmem:[%s2] sm:$0x3]
          %v693 = vlaneseq
          %v694 = vshrl.u32 %v693, 7
          %v695 = vsub.s32 0, %v694
          %v696 = vrot.slane %v691, %v695
          %v697 = vlaneseq
          %v698 = vshrl.u32 %v697, 7
          %v699 = vsub.s32 1, %v698
          %v700 = vrot.slane %v691, %v699
          %v703 = vadd.f32 %v659, %v696
          %v704 = vadd.f32 %v660, %v700
          %v705 = vadd.f32 %v661, %v696
          %v706 = vadd.f32 %v662, %v700
          %v707 = vadd.f32 %v663, %v696
          %v708 = vadd.f32 %v664, %v700
          %v709 = vadd.f32 %v665, %v696
          %v710 = vadd.f32 %v666, %v700
          %v711 = vadd.f32 %v667, %v696
          %v712 = vadd.f32 %v668, %v700
          %v713 = vadd.f32 %v669, %v696
          %v714 = vadd.f32 %v670, %v700
          %v715 = vadd.f32 %v671, %v696
          %v716 = vadd.f32 %v672, %v700
          %v717 = vadd.f32 %v673, %v696
          %v718 = vadd.f32 %v674, %v700
          %v719 = vadd.f32 %v675, %v696
          %v720 = vadd.f32 %v676, %v700
          %v721 = vadd.f32 %v677, %v696
          %v722 = vadd.f32 %v678, %v700
          %v723 = vadd.f32 %v679, %v696
          %v724 = vadd.f32 %v680, %v700
          %v725 = vadd.f32 %v681, %v696
          %v726 = vadd.f32 %v682, %v700
          %v727 = vadd.f32 %v683, %v696
          %v728 = vadd.f32 %v684, %v700
          %v729 = vadd.f32 %v685, %v696
          %v730 = vadd.f32 %v686, %v700
          %v731 = vadd.f32 %v687, %v696
          %v732 = vadd.f32 %v688, %v700
          %v733 = vadd.f32 %v689, %v696
          %v734 = vadd.f32 %v690, %v700
          %vm735 = vcmp.ge.f32.partialorder %v703, 0.0
          %vm736 = vcmp.ge.f32.partialorder %v704, 0.0
          %vm737 = vcmp.ge.f32.partialorder %v705, 0.0
          %vm738 = vcmp.ge.f32.partialorder %v706, 0.0
          %vm739 = vcmp.ge.f32.partialorder %v707, 0.0
          %vm740 = vcmp.ge.f32.partialorder %v708, 0.0
          %vm741 = vcmp.ge.f32.partialorder %v709, 0.0
          %vm742 = vcmp.ge.f32.partialorder %v710, 0.0
          %vm743 = vcmp.ge.f32.partialorder %v711, 0.0
          %vm744 = vcmp.ge.f32.partialorder %v712, 0.0
          %vm745 = vcmp.ge.f32.partialorder %v713, 0.0
          %vm746 = vcmp.ge.f32.partialorder %v714, 0.0
          %vm747 = vcmp.ge.f32.partialorder %v715, 0.0
          %vm748 = vcmp.ge.f32.partialorder %v716, 0.0
          %vm749 = vcmp.ge.f32.partialorder %v717, 0.0
          %vm750 = vcmp.ge.f32.partialorder %v718, 0.0
          %vm751 = vcmp.ge.f32.partialorder %v719, 0.0
          %vm752 = vcmp.ge.f32.partialorder %v720, 0.0
          %vm753 = vcmp.ge.f32.partialorder %v721, 0.0
          %vm754 = vcmp.ge.f32.partialorder %v722, 0.0
          %vm755 = vcmp.ge.f32.partialorder %v723, 0.0
          %vm756 = vcmp.ge.f32.partialorder %v724, 0.0
          %vm757 = vcmp.ge.f32.partialorder %v725, 0.0
          %vm758 = vcmp.ge.f32.partialorder %v726, 0.0
          %vm759 = vcmp.ge.f32.partialorder %v727, 0.0
          %vm760 = vcmp.ge.f32.partialorder %v728, 0.0
          %vm761 = vcmp.ge.f32.partialorder %v729, 0.0
          %vm762 = vcmp.ge.f32.partialorder %v730, 0.0
          %vm763 = vcmp.ge.f32.partialorder %v731, 0.0
          %vm764 = vcmp.ge.f32.partialorder %v732, 0.0
          %vm765 = vcmp.ge.f32.partialorder %v733, 0.0
          %vm766 = vcmp.ge.f32.partialorder %v734, 0.0
          %v767 = vmul.f32 %v703, 0.01
          %v768 = vmul.f32 %v704, 0.01
          %v769 = vmul.f32 %v705, 0.01
          %v770 = vmul.f32 %v706, 0.01
          %v771 = vmul.f32 %v707, 0.01
          %v772 = vmul.f32 %v708, 0.01
          %v773 = vmul.f32 %v709, 0.01
          %v774 = vmul.f32 %v710, 0.01
          %v775 = vmul.f32 %v711, 0.01
          %v776 = vmul.f32 %v712, 0.01
          %v777 = vmul.f32 %v713, 0.01
          %v778 = vmul.f32 %v714, 0.01
          %v779 = vmul.f32 %v715, 0.01
          %v780 = vmul.f32 %v716, 0.01
          %v781 = vmul.f32 %v717, 0.01
          %v782 = vmul.f32 %v718, 0.01
          %v783 = vmul.f32 %v719, 0.01
          %v784 = vmul.f32 %v720, 0.01
          %v785 = vmul.f32 %v721, 0.01
          %v786 = vmul.f32 %v722, 0.01
          %v787 = vmul.f32 %v723, 0.01
          %v788 = vmul.f32 %v724, 0.01
          %v789 = vmul.f32 %v725, 0.01
          %v790 = vmul.f32 %v726, 0.01
          %v791 = vmul.f32 %v727, 0.01
          %v792 = vmul.f32 %v728, 0.01
          %v793 = vmul.f32 %v729, 0.01
          %v794 = vmul.f32 %v730, 0.01
          %v795 = vmul.f32 %v731, 0.01
          %v796 = vmul.f32 %v732, 0.01
          %v797 = vmul.f32 %v733, 0.01
          %v798 = vmul.f32 %v734, 0.01
          %v799 = vsel %vm735, %v703, %v767
          %v800 = vsel %vm736, %v704, %v768
          %v801 = vsel %vm737, %v705, %v769
          %v802 = vsel %vm738, %v706, %v770
          %v803 = vsel %vm739, %v707, %v771
          %v804 = vsel %vm740, %v708, %v772
          %v805 = vsel %vm741, %v709, %v773
          %v806 = vsel %vm742, %v710, %v774
          %v807 = vsel %vm743, %v711, %v775
          %v808 = vsel %vm744, %v712, %v776
          %v809 = vsel %vm745, %v713, %v777
          %v810 = vsel %vm746, %v714, %v778
          %v811 = vsel %vm747, %v715, %v779
          %v812 = vsel %vm748, %v716, %v780
          %v813 = vsel %vm749, %v717, %v781
          %v814 = vsel %vm750, %v718, %v782
          %v815 = vsel %vm751, %v719, %v783
          %v816 = vsel %vm752, %v720, %v784
          %v817 = vsel %vm753, %v721, %v785
          %v818 = vsel %vm754, %v722, %v786
          %v819 = vsel %vm755, %v723, %v787
          %v820 = vsel %vm756, %v724, %v788
          %v821 = vsel %vm757, %v725, %v789
          %v822 = vsel %vm758, %v726, %v790
          %v823 = vsel %vm759, %v727, %v791
          %v824 = vsel %vm760, %v728, %v792
          %v825 = vsel %vm761, %v729, %v793
          %v826 = vsel %vm762, %v730, %v794
          %v827 = vsel %vm763, %v731, %v795
          %v828 = vsel %vm764, %v732, %v796
          %v829 = vsel %vm765, %v733, %v797
          %v830 = vsel %vm766, %v734, %v798
          %v831 = vpack.c.bf16 %v801, %v799
          %v832 = vpack.c.bf16 %v802, %v800
          %v833 = vpack.c.bf16 %v805, %v803
          %v834 = vpack.c.bf16 %v806, %v804
          %v835 = vpack.c.bf16 %v809, %v807
          %v836 = vpack.c.bf16 %v810, %v808
          %v837 = vpack.c.bf16 %v813, %v811
          %v838 = vpack.c.bf16 %v814, %v812
          %v839 = vpack.c.bf16 %v817, %v815
          %v840 = vpack.c.bf16 %v818, %v816
          %v841 = vpack.c.bf16 %v821, %v819
          %v842 = vpack.c.bf16 %v822, %v820
          %v843 = vpack.c.bf16 %v825, %v823
          %v844 = vpack.c.bf16 %v826, %v824
          %v845 = vpack.c.bf16 %v829, %v827
          %v846 = vpack.c.bf16 %v830, %v828
          %v863 = vunpack.c.l.b16 %v831
          %v864 = vunpack.c.l.b16 %v832
          %v865 = vunpack.c.h.b16 %v831
          %v866 = vunpack.c.h.b16 %v832
          %v867 = vunpack.c.l.b16 %v833
          %v868 = vunpack.c.l.b16 %v834
          %v869 = vunpack.c.h.b16 %v833
          %v870 = vunpack.c.h.b16 %v834
          %v871 = vunpack.c.l.b16 %v835
          %v872 = vunpack.c.l.b16 %v836
          %v873 = vunpack.c.h.b16 %v835
          %v874 = vunpack.c.h.b16 %v836
          %v875 = vunpack.c.l.b16 %v837
          %v876 = vunpack.c.l.b16 %v838
          %v877 = vunpack.c.h.b16 %v837
          %v878 = vunpack.c.h.b16 %v838
          %v879 = vunpack.c.l.b16 %v839
          %v880 = vunpack.c.l.b16 %v840
          %v881 = vunpack.c.h.b16 %v839
          %v882 = vunpack.c.h.b16 %v840
          %v883 = vunpack.c.l.b16 %v841
          %v884 = vunpack.c.l.b16 %v842
          %v885 = vunpack.c.h.b16 %v841
          %v886 = vunpack.c.h.b16 %v842
          %v887 = vunpack.c.l.b16 %v843
          %v888 = vunpack.c.l.b16 %v844
          %v889 = vunpack.c.h.b16 %v843
          %v890 = vunpack.c.h.b16 %v844
          %v891 = vunpack.c.l.b16 %v845
          %v892 = vunpack.c.l.b16 %v846
          %v893 = vunpack.c.h.b16 %v845
          %v894 = vunpack.c.h.b16 %v846
          %v895 = vpack.c.b16 %v864, %v863
          %v896 = vpack.c.b16 %v866, %v865
          %v897 = vpack.c.b16 %v868, %v867
          %v898 = vpack.c.b16 %v870, %v869
          %v899 = vpack.c.b16 %v872, %v871
          %v900 = vpack.c.b16 %v874, %v873
          %v901 = vpack.c.b16 %v876, %v875
          %v902 = vpack.c.b16 %v878, %v877
          %v903 = vpack.c.b16 %v880, %v879
          %v904 = vpack.c.b16 %v882, %v881
          %v905 = vpack.c.b16 %v884, %v883
          %v906 = vpack.c.b16 %v886, %v885
          %v907 = vpack.c.b16 %v888, %v887
          %v908 = vpack.c.b16 %v890, %v889
          %v909 = vpack.c.b16 %v892, %v891
          %v910 = vpack.c.b16 %v894, %v893
          %927 = vst [vmem:[%s245] sm:$0xff] %v895
          %928 = vst [vmem:[%s245 + $0x8] sm:$0xff] %v896
          %929 = vst [vmem:[%s245 + $0x10] sm:$0xff] %v897
          %930 = vst [vmem:[%s245 + $0x18] sm:$0xff] %v898
          %931 = vst [vmem:[%s245 + $0x20] sm:$0xff] %v899
          %932 = vst [vmem:[%s245 + $0x28] sm:$0xff] %v900
          %933 = vst [vmem:[%s245 + $0x30] sm:$0xff] %v901
          %934 = vst [vmem:[%s245 + $0x38] sm:$0xff] %v902
          %935 = vst [vmem:[%s245 + $0x40] sm:$0xff] %v903
          %936 = vst [vmem:[%s245 + $0x48] sm:$0xff] %v904
          %937 = vst [vmem:[%s245 + $0x50] sm:$0xff] %v905
          %938 = vst [vmem:[%s245 + $0x58] sm:$0xff] %v906
          %939 = vst [vmem:[%s245 + $0x60] sm:$0xff] %v907
          %940 = vst [vmem:[%s245 + $0x68] sm:$0xff] %v908
          %941 = vst [vmem:[%s245 + $0x70] sm:$0xff] %v909
          %942 = vst [vmem:[%s245 + $0x78] sm:$0xff] %v910
        $region48: #{tpu_custom_call.1} parent=31 // pred_fallthru
          _
        %s943 = sand.u32 %s118, 1
        %s944 = scalar_lea.sflag [#allocation5], %s943
        %s945 = sand.u32 %s118, 1
        %s946 = smul.addr %s945, 128
        %s947 = scalar_lea.vmem [#allocation8], %s946
        // Predicated region
        $region49: #{tpu_custom_call.1} parent=31 // pred_check
          %p948 = pneg %p128
        $region50: #{tpu_custom_call.1} parent=31 // pred_check_branch
          %950 = sbr.rel (%p948) target = $region52
        $region51: #{tpu_custom_call.1} parent=31 // pred_region
          %s951 = smul.u32 16, %s27
          %s953 = ssub.s32 2048, 2048
          %954 = vsyncadd %s944, %s953
          %s955 = smul.addr %s951, 2
          %s956 = smul.addr %s955, 64
          %s957 = scalar_lea.hbm %s3, %s956
          %s958 = sshll.u32 %s947, 4
          %s959 = int_to_ptr.vmem [resolvable:$true] %s958
          %964 = dma.vmem_to_hbm [thread:$0]  %s959, 2048, %s957, %s944, 128, 128, 8
        $region52: #{tpu_custom_call.1} parent=31 // pred_fallthru
          _
      $region32: #{tpu_custom_call.1} parent=5 // pred_fallthru
        _
      %p965 = scmp.le.s32.totalorder 2, %s18
      // Predicated region
      $region53: #{tpu_custom_call.1} parent=5 // pred_check
        %p966 = pneg %p965
      $region54: #{tpu_custom_call.1} parent=5 // pred_check_branch
        %968 = sbr.rel (%p966) target = $region56
      $region55: #{tpu_custom_call.1} parent=5 // pred_region
        %s969 = ssub.s32 %s18, 2
        // Predicated region
        $region57: #{tpu_custom_call.1} parent=55 // pred_check
          %p970 = pneg %p134
        $region58: #{tpu_custom_call.1} parent=55 // pred_check_branch
          %972 = sbr.rel (%p970) target = $region60
        $region59: #{tpu_custom_call.1} parent=55 // pred_region
          %s973 = sand.u32 %s119, 1
          %s974 = scalar_lea.sflag [#allocation5], %s973
          %s975 = sand.u32 %s119, 1
          %s976 = smul.addr %s975, 128
          %s977 = scalar_lea.vmem [#allocation8], %s976
          %978 = dma.done %s974, 2048
        $region60: #{tpu_custom_call.1} parent=55 // pred_fallthru
          _
      $region56: #{tpu_custom_call.1} parent=5 // pred_fallthru
        _
    $region6: #{tpu_custom_call.1} parent=1 // loop_footer
      %s22 = sadd.s32 1, %s18
    $region7: #{tpu_custom_call.1} parent=1 // loop_footer_branch
      %17 = sbr.rel target = $region3
    $region8: #{tpu_custom_call.1} parent=1 // loop_exit
      _
    %979 = vsyncpa [#allocation4], 1
    %s980 = scalar_lea.sflag [#allocation4], 1
    %981 = vsyncpa %s980, 1
    %982 = vsyncpa [#allocation7], 1
    %s983 = scalar_lea.sflag [#allocation7], 1
    %984 = vsyncpa %s983, 1
    %985 = vsyncpa [#allocation5], 1
    %s986 = scalar_lea.sflag [#allocation5], 1
    %987 = vsyncpa %s986, 1

</llo_original>
